<compile_context>
chip_gen: v6e
topology: v6e:2x2x1
jax: 0.10.0
libtpu: 0.0.40
codegen_flags: <defaults>
</compile_context>

<pallas_src>
import math
import functools

import jax
import jax.numpy as jnp
from jax.experimental import pallas as pl
from jax.experimental.pallas import tpu as pltpu


def make_positional_encoding(d_model: int, max_seq_len: int = 160) -> jnp.ndarray:
    """(max_seq_len, d_model) sinusoidal PE table; matches the PyTorch __init__
    exactly, including the odd-d_model branch (cos uses div_term[:-1])."""
    position = jnp.arange(0, max_seq_len, dtype=jnp.float32)[:, None]          # (L, 1)
    div_term = jnp.exp(
        jnp.arange(0, d_model, 2, dtype=jnp.float32) * (-math.log(10000.0) / d_model)
    )                                                                            # (ceil(D/2),)
    pe = jnp.zeros((max_seq_len, d_model), dtype=jnp.float32)
    pe = pe.at[:, 0::2].set(jnp.sin(position * div_term))
    if d_model % 2 != 0:
        pe = pe.at[:, 1::2].set(jnp.cos(position * div_term[:-1]))
    else:
        pe = pe.at[:, 1::2].set(jnp.cos(position * div_term))
    return pe                                                                    # (L, D)


def _pos_enc_kernel(x_ref, pe_ref, o_ref, *, scale: float):
    # x_ref: (rows, cols) tile of the flattened input.
    # pe_ref: (1, cols) tile of the flattened PE row (broadcast over the rows = batch).
    # o_ref: (rows, cols) output tile.
    y = x_ref[...].astype(jnp.float32) * scale + pe_ref[...]
    o_ref[...] = y.astype(o_ref.dtype)


def _pick_block(n_rows: int, n_cols: int, itemsize: int, max_block_bytes: int):
    """Choose a (block_rows, block_cols) tile obeying the TPU (8,128)-or-full rule
    and staying under max_block_bytes per input buffer."""
    row_bytes = n_cols * itemsize
    if row_bytes <= max_block_bytes:
        rows_fit = max_block_bytes // row_bytes
        if rows_fit >= n_rows:
            return n_rows, n_cols                      # whole problem in one tile
        block_rows = max(8, (rows_fit // 8) * 8)       # multiple of 8 sublanes
        return min(block_rows, n_rows), n_cols
    # Single row is bigger than the budget: tile the column (lane) dimension too.
    cols_fit = (max_block_bytes // itemsize // 128) * 128
    block_cols = min(max(128, cols_fit), n_cols)       # multiple of 128 lanes (or full)
    block_rows = n_rows if n_rows <= 8 else 8
    return block_rows, block_cols


def positional_encoder(x: jnp.ndarray, pe_table: jnp.ndarray, d_model: int,
                       *, max_block_bytes: int = 4 << 20) -> jnp.ndarray:
    """Pallas equivalent of PositionalEncoder.forward.

    Args:
      x:        (batch, seq_len, d_model)
      pe_table: (max_seq_len, d_model) float32, max_seq_len >= seq_len
    Returns:
      array with the same shape/dtype as x.
    """
    B, S, D = x.shape
    assert D == d_model
    assert S <= pe_table.shape[0]
    scale = math.sqrt(d_model)

    # Lane-dense 2-D view: rows = batch, cols = seq_len * d_model (contiguous reshape,
    # no data movement). PE broadcasts over rows, exactly like pe[:, :S, :] over batch.
    n_rows, n_cols = B, S * D
    x2 = x.reshape(n_rows, n_cols)
    pe2 = pe_table[:S, :].reshape(1, n_cols).astype(jnp.float32)

    itemsize = jnp.dtype(x.dtype).itemsize
    block_rows, block_cols = _pick_block(n_rows, n_cols, itemsize, max_block_bytes)
    grid = (pl.cdiv(n_rows, block_rows), pl.cdiv(n_cols, block_cols))

    kernel = functools.partial(_pos_enc_kernel, scale=scale)
    bytes_accessed = 2 * x2.size * itemsize + pe2.size * 4   # read x + write out + read pe

    out2 = pl.pallas_call(
        kernel,
        out_shape=jax.ShapeDtypeStruct((n_rows, n_cols), x.dtype),
        grid_spec=pltpu.PrefetchScalarGridSpec(
            num_scalar_prefetch=0,
            grid=grid,
            in_specs=[
                # Big, lane-dense tiles of the flattened input.
                pl.BlockSpec((block_rows, block_cols), lambda i, j: (i, j)),
                # PE row: same row for every row-tile (broadcast over batch),
                # sliced along columns together with x.
                pl.BlockSpec((1, block_cols), lambda i, j: (0, j)),
            ],
            out_specs=pl.BlockSpec((block_rows, block_cols), lambda i, j: (i, j)),
        ),
        compiler_params=pltpu.CompilerParams(
            # Both axes are independent -> shardable across v7x's 2 TensorCores.
            dimension_semantics=("parallel", "parallel"),
            # Above v5e's 16 MiB default scoped limit, well under v7x's 64 MiB physical.
            vmem_limit_bytes=48 << 20,
        ),
        cost_estimate=pl.CostEstimate(
            flops=2 * B * S * D, transcendentals=0, bytes_accessed=bytes_accessed),
    )(x2, pe2)

    return out2.reshape(B, S, D)


if __name__ == "__main__":
    # Small shapes consistent with the forward: (batch, seq_len, d_model)
    batch, seq_len, d_model, max_seq_len = 2, 8, 32, 160

    key = jax.random.PRNGKey(0)
    x = jax.random.normal(key, (batch, seq_len, d_model), dtype=jnp.float32)
    pe_table = make_positional_encoding(d_model, max_seq_len)

    out = jax.block_until_ready(positional_encoder(x, pe_table, d_model))
    ref = x * math.sqrt(d_model) + pe_table[None, :seq_len, :]
    assert out.shape == x.shape
    assert jnp.allclose(out, ref, atol=1e-5, rtol=1e-5)

    # Odd-d_model path (exercises the div_term[:-1] cos branch and a non-128-multiple
    # column extent handled via a full-extent block).
    d_odd = 33
    pe_odd = make_positional_encoding(d_odd, max_seq_len)
    x_odd = jax.random.normal(jax.random.PRNGKey(1), (batch, seq_len, d_odd),
                              dtype=jnp.float32)
    out_odd = jax.block_until_ready(positional_encoder(x_odd, pe_odd, d_odd))
    ref_odd = x_odd * math.sqrt(d_odd) + pe_odd[None, :seq_len, :]
    assert jnp.allclose(out_odd, ref_odd, atol=1e-5, rtol=1e-5)

    print("KERNEL_OK")
</pallas_src>

<mosaic_0001>
module attributes {stable_mosaic.version = 11 : i64} {
  func.func @_pos_enc_kernel(%arg0: i32, %arg1: i32, %arg2: memref<2x256xf32, #tpu.memory_space<vmem>>, %arg3: memref<1x256xf32, #tpu.memory_space<vmem>>, %arg4: memref<2x256xf32, #tpu.memory_space<vmem>>) attributes {dimension_semantics = [#tpu.dimension_semantics<parallel>, #tpu.dimension_semantics<parallel>], iteration_bounds = array<i64: 1, 1>, scalar_prefetch = 0 : i64, scratch_operands = 0 : i64, tpu.core_type = #tpu.core_type<tc>, window_params = [{transform_indices = @transform_0, window_bounds = array<i64: 2, 256>}, {transform_indices = @transform_1, window_bounds = array<i64: 1, 256>}, {transform_indices = @transform_2, window_bounds = array<i64: 2, 256>}]} {
    %c0 = arith.constant 0 : index
    %c0_0 = arith.constant 0 : index
    %0 = vector.load %arg2[%c0, %c0_0] : memref<2x256xf32, #tpu.memory_space<vmem>>, vector<2x256xf32>
    %cst = arith.constant 5.65685415 : f32
    %1 = vector.broadcast %cst : f32 to vector<2x256xf32>
    %2 = arith.mulf %0, %1 : vector<2x256xf32>
    %c0_1 = arith.constant 0 : index
    %c0_2 = arith.constant 0 : index
    %3 = vector.load %arg3[%c0_1, %c0_2] : memref<1x256xf32, #tpu.memory_space<vmem>>, vector<1x256xf32>
    %4 = vector.broadcast %3 : vector<1x256xf32> to vector<2x256xf32>
    %5 = arith.addf %2, %4 : vector<2x256xf32>
    %c0_3 = arith.constant 0 : index
    %c0_4 = arith.constant 0 : index
    %6 = vector.load %arg4[%c0_3, %c0_4] : memref<2x256xf32, #tpu.memory_space<vmem>>, vector<2x256xf32>
    tpu.vector_store %arg4[%c0_3, %c0_4], %5 {strides = array<i32>} : memref<2x256xf32, #tpu.memory_space<vmem>>, vector<2x256xf32>,
    return
  }
  func.func @transform_0(%arg0: i32, %arg1: i32) -> (i32, i32) {
    %c0_i32 = arith.constant 0 : i32
    return %arg0, %arg1 : i32, i32
  }
  func.func @transform_1(%arg0: i32, %arg1: i32) -> (i32, i32) {
    %c0_i32 = arith.constant 0 : i32
    %c0_i32_0 = arith.constant 0 : i32
    return %c0_i32, %arg1 : i32, i32
  }
  func.func @transform_2(%arg0: i32, %arg1: i32) -> (i32, i32) {
    %c0_i32 = arith.constant 0 : i32
    return %arg0, %arg1 : i32, i32
  }
}

</mosaic_0001>

<llo_original>
// kernel: tpu_custom_call.1
$region0: #{tpu_custom_call.1}
  #allocation0 [shape = 'u32[]', space=smem, size = 0x4, offset = 0x4, fixed_abs, tag = 'smem constant byte address 0x4 - core index']
  #allocation1 [shape = 'u32[144,128]{1,0:T(1,128)}', space=vmem, size = 0x12000, scoped, tag = 'internal scratch']
  %s0 = inlined_call_operand.hbm [shape: f32[2,256], index: 0, kind: input, shape index: {}]
  %s1 = inlined_call_operand.hbm [shape: f32[1,256], index: 1, kind: input, shape index: {}]
  %s2 = inlined_call_operand.hbm [shape: f32[2,256], index: 2, kind: output, shape index: {}]
  %s3 = sld [smem:[#allocation0]]
  $region26: #{tpu_custom_call.1} parent=0
    _
  %s5 = ssub.s32 1, %s3
  %s6 = scalar_select 0, %s5, %s3
  $region1: #{tpu_custom_call.1} parent=0
    #allocation2 [shape = 'u8[2048]{0}', space=vmem, size = 0x800, scoped, tag = 'input window, operand 0, single buffered']
    #allocation3 [shape = 's32[1]{0}', space=sflag, size = 0x4, scoped, tag = 'scoped memory for tpu_custom_call.1']
    #allocation4 [shape = 's32[1]{0}', space=sflag, size = 0x4, scoped, tag = 'scoped memory for tpu_custom_call.1']
    #allocation5 [shape = 'u8[1024]{0}', space=vmem, size = 0x400, scoped, tag = 'input window, operand 1, single buffered']
    #allocation6 [shape = 's32[1]{0}', space=sflag, size = 0x4, scoped, tag = 'scoped memory for tpu_custom_call.1']
    #allocation7 [shape = 'u8[2048]{0}', space=vmem, size = 0x800, scoped, tag = 'output window, operand 0, single buffered']
    %7 = vsyncpa [#allocation3], 0
    %8 = vsyncpa [#allocation6], 0
    %9 = vsyncpa [#allocation4], 0
    // Predicated region
    $region2: #{tpu_custom_call.1} parent=1 // pred_check
      _
    $region3: #{tpu_custom_call.1} parent=1 // pred_check_branch
      %11 = sbr.rel (0) target = $region5
    $region4: #{tpu_custom_call.1} parent=1 // pred_region
      %s13 = ssub.s32 64, 64
      %14 = vsyncadd [#allocation3], %s13
      %s16 = sshll.u32 [#allocation2], 4
      %s17 = int_to_ptr.vmem [resolvable:$true] %s16
      %19 = dma.hbm_to_vmem [thread:$0]  %s0, 64, %s17, [#allocation3]
    $region5: #{tpu_custom_call.1} parent=1 // pred_fallthru
      _
    // Predicated region
    $region6: #{tpu_custom_call.1} parent=1 // pred_check
      _
    $region7: #{tpu_custom_call.1} parent=1 // pred_check_branch
      %21 = sbr.rel (0) target = $region9
    $region8: #{tpu_custom_call.1} parent=1 // pred_region
      %s23 = ssub.s32 32, 32
      %24 = vsyncadd [#allocation6], %s23
      %s26 = sshll.u32 [#allocation5], 4
      %s27 = int_to_ptr.vmem [resolvable:$true] %s26
      %29 = dma.hbm_to_vmem [thread:$0]  %s1, 32, %s27, [#allocation6]
    $region9: #{tpu_custom_call.1} parent=1 // pred_fallthru
      _
    // Predicated region
    $region10: #{tpu_custom_call.1} parent=1 // pred_check
      _
    $region11: #{tpu_custom_call.1} parent=1 // pred_check_branch
      %31 = sbr.rel (0) target = $region13
    $region12: #{tpu_custom_call.1} parent=1 // pred_region
      %32 = dma.done [#allocation3], 64
    $region13: #{tpu_custom_call.1} parent=1 // pred_fallthru
      _
    // Predicated region
    $region14: #{tpu_custom_call.1} parent=1 // pred_check
      _
    $region15: #{tpu_custom_call.1} parent=1 // pred_check_branch
      %34 = sbr.rel (0) target = $region17
    $region16: #{tpu_custom_call.1} parent=1 // pred_region
      %35 = dma.done [#allocation6], 32
    $region17: #{tpu_custom_call.1} parent=1 // pred_fallthru
      _
    %v36 = vld [vmem:[#allocation2] sm:$0xf]
    %v37 = vmul.f32 %v36, 5.656854
    %v38 = vld [vmem:[#allocation5] sm:$0x3]
    %v40 = vlaneseq
    %v41 = vshrl.u32 %v40, 7
    %v42 = vsub.s32 0, %v41
    %v43 = vrot.slane %v38, %v42
    %v44 = vlaneseq
    %v45 = vshrl.u32 %v44, 7
    %v46 = vsub.s32 1, %v45
    %v47 = vrot.slane %v38, %v46
    %v48 = vcombine.low %v43, %v47
    %v50 = vunpack.c.l.s4 1983009808
    %v51 = vunpack.c.0.s8 %v50
    %v52 = vlaneseq
    %v53 = vshrl.u32 %v52, 7
    %v54 = vsub.s32 %v51, %v53
    %v55 = vrot.slane %v48, %v54
    %v57 = vadd.f32 %v37, %v55
    %58 = vst [vmem:[#allocation7] sm:$0xf] %v57
    // Predicated region
    $region18: #{tpu_custom_call.1} parent=1 // pred_check
      _
    $region19: #{tpu_custom_call.1} parent=1 // pred_check_branch
      %60 = sbr.rel (0) target = $region21
    $region20: #{tpu_custom_call.1} parent=1 // pred_region
      %s62 = ssub.s32 64, 64
      %63 = vsyncadd [#allocation4], %s62
      %s65 = sshll.u32 [#allocation7], 4
      %s66 = int_to_ptr.vmem [resolvable:$true] %s65
      %68 = dma.vmem_to_hbm [thread:$0]  %s66, 64, %s2, [#allocation4]
    $region21: #{tpu_custom_call.1} parent=1 // pred_fallthru
      _
    // Predicated region
    $region22: #{tpu_custom_call.1} parent=1 // pred_check
      _
    $region23: #{tpu_custom_call.1} parent=1 // pred_check_branch
      %70 = sbr.rel (0) target = $region25
    $region24: #{tpu_custom_call.1} parent=1 // pred_region
      %71 = dma.done [#allocation4], 64
    $region25: #{tpu_custom_call.1} parent=1 // pred_fallthru
      _
    %72 = vsyncpa [#allocation3], 1
    %73 = vsyncpa [#allocation6], 1
    %74 = vsyncpa [#allocation4], 1

</llo_original>
